<compile_context>
chip_gen: v5e
topology: v5e:2x2
jax: 0.10.0
libtpu: 0.0.40
codegen_flags: <defaults>
</compile_context>

<pallas_src>
import functools

import jax
import jax.numpy as jnp
from jax import lax
from jax.experimental import pallas as pl
from jax.experimental.pallas import tpu as pltpu


def _lstm_kernel(x_ref, wih_ref, whh_ref, b_ref, wfc_ref, bfc_ref,
                 *rest, has_hidden: bool):
    """Single-layer LSTM recurrence + output projection, fully in VMEM.

    x_ref   : (T, I)        input sequence
    wih_ref : (I, 4H)       W_ih^T
    whh_ref : (H, 4H)       W_hh^T
    b_ref   : (1, 4H)       b_ih + b_hh
    wfc_ref : (H, Opad)     W_fc^T, zero-padded to a lane-dense width
    bfc_ref : (1, Opad)     b_fc, zero-padded
    [h0_ref : (1, H)]       initial hidden state   (only if has_hidden)
    [c0_ref : (1, H)]       initial cell state     (only if has_hidden)
    out_ref : (T, Opad)     projected outputs (lane-dense)
    hn_ref  : (1, H)        final hidden state
    cn_ref  : (1, H)        final cell state
    gx_ref  : (T, 4H)       scratch: hoisted input projection + bias
    hs_ref  : (T, H)        scratch: all hidden states
    """
    if has_hidden:
        (h0_ref, c0_ref, out_ref, hn_ref, cn_ref, gx_ref, hs_ref) = rest
    else:
        (out_ref, hn_ref, cn_ref, gx_ref, hs_ref) = rest

    T = x_ref.shape[0]
    H = hn_ref.shape[-1]

    # Hoist the input projection out of the serial chain:
    # one (T, 4H) MXU matmul, bias folded in.
    gx_ref[...] = (jnp.dot(x_ref[...], wih_ref[...],
                           preferred_element_type=jnp.float32)
                   + b_ref[...])

    if has_hidden:
        h0 = h0_ref[...]
        c0 = c0_ref[...]
    else:
        h0 = jnp.zeros((1, H), jnp.float32)
        c0 = jnp.zeros((1, H), jnp.float32)

    whh = whh_ref[...]                                   # keep RHS resident

    def step(t, carry):
        h, c = carry                                     # (1, H) vreg values
        gates = (jnp.dot(h, whh, preferred_element_type=jnp.float32)
                 + gx_ref[pl.ds(t, 1), :])               # (1, 4H)
        # Two whole-vreg EUP ops instead of four sub-vreg activations.
        sg = jax.nn.sigmoid(gates)                       # (1, 4H)
        th = jnp.tanh(gates)                             # (1, 4H)
        i_g = sg[:, 0:H]
        f_g = sg[:, H:2 * H]
        g_g = th[:, 2 * H:3 * H]
        o_g = sg[:, 3 * H:4 * H]
        c_new = f_g * c + i_g * g_g
        h_new = o_g * jnp.tanh(c_new)
        hs_ref[pl.ds(t, 1), :] = h_new
        return (h_new, c_new)

    h_fin, c_fin = lax.fori_loop(0, T, step, (h0, c0), unroll=True)

    hn_ref[...] = h_fin
    cn_ref[...] = c_fin

    # fc: out = H_all @ W_fc^T + b_fc  (single MXU matmul over all timesteps,
    # lane-dense output store).
    out_ref[...] = (jnp.dot(hs_ref[...], wfc_ref[...],
                            preferred_element_type=jnp.float32)
                    + bfc_ref[...])


@jax.jit
def lstm_forward(x, params, hidden=None):
    """Mirrors LSTM.forward(x, hidden) with batch size 1 (x.unsqueeze(0))."""
    T, I = x.shape
    H = params["w_hh"].shape[1]
    O = params["w_fc"].shape[0]
    O_pad = ((O + 127) // 128) * 128                     # lane-dense output

    has_hidden = hidden is not None

    # Pre-transpose / combine params (glue, stays in plain JAX).
    w_ih_t = params["w_ih"].T                            # (I, 4H)
    w_hh_t = params["w_hh"].T                            # (H, 4H)
    b = (params["b_ih"] + params["b_hh"]).reshape(1, 4 * H)
    w_fc_t = jnp.pad(params["w_fc"].T, ((0, 0), (0, O_pad - O)))   # (H, Opad)
    b_fc = jnp.pad(params["b_fc"], (0, O_pad - O)).reshape(1, O_pad)

    vmem = pl.BlockSpec(memory_space=pltpu.MemorySpace.VMEM)

    inputs = [x.astype(jnp.float32), w_ih_t, w_hh_t, b, w_fc_t, b_fc]
    if has_hidden:
        inputs.append(hidden[0].reshape(1, H).astype(jnp.float32))
        inputs.append(hidden[1].reshape(1, H).astype(jnp.float32))

    kernel = functools.partial(_lstm_kernel, has_hidden=has_hidden)

    out_pad, h_n, c_n = pl.pallas_call(
        kernel,
        out_shape=(
            jax.ShapeDtypeStruct((T, O_pad), jnp.float32),
            jax.ShapeDtypeStruct((1, H), jnp.float32),
            jax.ShapeDtypeStruct((1, H), jnp.float32),
        ),
        in_specs=[vmem] * len(inputs),
        out_specs=(vmem, vmem, vmem),
        scratch_shapes=[
            pltpu.VMEM((T, 4 * H), jnp.float32),   # hoisted gate projections
            pltpu.VMEM((T, H), jnp.float32),       # all hidden states
        ],
    )(*inputs)

    out = out_pad[:, :O]

    # hidden returned as (h_n, c_n), each (num_layers=1, batch=1, H),
    # matching PyTorch's nn.LSTM convention.
    return out, (h_n.reshape(1, 1, H), c_n.reshape(1, 1, H))


def init_params(key, input_size, hidden_size, output_size):
    """Deterministic init matching PyTorch's nn.LSTM / nn.Linear shapes."""
    ks = jax.random.split(key, 6)
    k_lstm = 1.0 / jnp.sqrt(hidden_size)
    k_fc = 1.0 / jnp.sqrt(hidden_size)
    u = lambda k, shape, bound: jax.random.uniform(
        k, shape, jnp.float32, -bound, bound)
    return {
        "w_ih": u(ks[0], (4 * hidden_size, input_size), k_lstm),
        "w_hh": u(ks[1], (4 * hidden_size, hidden_size), k_lstm),
        "b_ih": u(ks[2], (4 * hidden_size,), k_lstm),
        "b_hh": u(ks[3], (4 * hidden_size,), k_lstm),
        "w_fc": u(ks[4], (output_size, hidden_size), k_fc),
        "b_fc": u(ks[5], (output_size,), k_fc),
    }


if __name__ == "__main__":
    input_size, hidden_size, output_size = 4, 32, 2
    seq_len = 8

    key = jax.random.PRNGKey(0)
    k_param, k_x = jax.random.split(key)
    params = init_params(k_param, input_size, hidden_size, output_size)
    x = jax.random.normal(k_x, (seq_len, input_size), jnp.float32)

    out, (h_n, c_n) = lstm_forward(x, params, hidden=None)
    jax.block_until_ready((out, h_n, c_n))

    assert out.shape == (seq_len, output_size)
    assert h_n.shape == (1, 1, hidden_size)
    assert c_n.shape == (1, 1, hidden_size)

    # Also exercise the explicit-hidden path (second segment of a sequence).
    out2, (h_n2, c_n2) = lstm_forward(x, params, hidden=(h_n, c_n))
    jax.block_until_ready((out2, h_n2, c_n2))
    assert out2.shape == (seq_len, output_size)

    print("KERNEL_OK")
</pallas_src>

<mosaic_0001>
module attributes {stable_mosaic.version = 11 : i64} {
  func.func @_lstm_kernel(%arg0: memref<8x4xf32, #tpu.memory_space<vmem>>, %arg1: memref<4x128xf32, #tpu.memory_space<vmem>>, %arg2: memref<32x128xf32, #tpu.memory_space<vmem>>, %arg3: memref<1x128xf32, #tpu.memory_space<vmem>>, %arg4: memref<32x128xf32, #tpu.memory_space<vmem>>, %arg5: memref<1x128xf32, #tpu.memory_space<vmem>>, %arg6: memref<8x128xf32, #tpu.memory_space<vmem>>, %arg7: memref<1x32xf32, #tpu.memory_space<vmem>>, %arg8: memref<1x32xf32, #tpu.memory_space<vmem>>, %arg9: memref<8x128xf32, #tpu.memory_space<vmem>>, %arg10: memref<8x32xf32, #tpu.memory_space<vmem>>) attributes {dimension_semantics = [], scalar_prefetch = 0 : i64, scratch_operands = 2 : i64, tpu.core_type = #tpu.core_type<tc>} {
    %c0 = arith.constant 0 : index
    %c0_0 = arith.constant 0 : index
    %0 = vector.load %arg0[%c0, %c0_0] : memref<8x4xf32, #tpu.memory_space<vmem>>, vector<8x4xf32>
    %c0_1 = arith.constant 0 : index
    %c0_2 = arith.constant 0 : index
    %1 = vector.load %arg1[%c0_1, %c0_2] : memref<4x128xf32, #tpu.memory_space<vmem>>, vector<4x128xf32>
    %cst = arith.constant dense<0.000000e+00> : vector<8x128xf32>
    %2 = tpu.matmul %0, %1, %cst {dimension_numbers = #tpu.dot_dimension_numbers<[1], [0], [0], [1], [0, 0, 1, 1], [], []>} : vector<8x4xf32>, vector<4x128xf32>, vector<8x128xf32> -> vector<8x128xf32>
    %c0_3 = arith.constant 0 : index
    %c0_4 = arith.constant 0 : index
    %3 = vector.load %arg3[%c0_3, %c0_4] : memref<1x128xf32, #tpu.memory_space<vmem>>, vector<1x128xf32>
    %4 = vector.broadcast %3 : vector<1x128xf32> to vector<8x128xf32>
    %5 = arith.addf %2, %4 : vector<8x128xf32>
    %c0_5 = arith.constant 0 : index
    %c0_6 = arith.constant 0 : index
    %6 = vector.load %arg9[%c0_5, %c0_6] : memref<8x128xf32, #tpu.memory_space<vmem>>, vector<8x128xf32>
    tpu.vector_store %arg9[%c0_5, %c0_6], %5 {strides = array<i32>} : memref<8x128xf32, #tpu.memory_space<vmem>>, vector<8x128xf32>,
    %cst_7 = arith.constant 0.000000e+00 : f32
    %7 = vector.broadcast %cst_7 : f32 to vector<1x32xf32>
    %cst_8 = arith.constant 0.000000e+00 : f32
    %8 = vector.broadcast %cst_8 : f32 to vector<1x32xf32>
    %c0_9 = arith.constant 0 : index
    %c0_10 = arith.constant 0 : index
    %9 = vector.load %arg2[%c0_9, %c0_10] : memref<32x128xf32, #tpu.memory_space<vmem>>, vector<32x128xf32>
    %c0_i32 = arith.constant 0 : i32
    %cst_11 = arith.constant dense<0.000000e+00> : vector<1x128xf32>
    %10 = tpu.matmul %7, %9, %cst_11 {dimension_numbers = #tpu.dot_dimension_numbers<[1], [0], [0], [1], [0, 0, 1, 1], [], []>} : vector<1x32xf32>, vector<32x128xf32>, vector<1x128xf32> -> vector<1x128xf32>
    %11 = arith.index_cast %c0_i32 : i32 to index
    %c0_12 = arith.constant 0 : index
    %12 = vector.load %arg9[%11, %c0_12] : memref<8x128xf32, #tpu.memory_space<vmem>>, vector<1x128xf32>
    %13 = arith.addf %10, %12 : vector<1x128xf32>
    %14 = arith.negf %13 : vector<1x128xf32>
    %15 = math.exp %14 : vector<1x128xf32>
    %cst_13 = arith.constant 1.000000e+00 : f32
    %16 = vector.broadcast %cst_13 : f32 to vector<1x128xf32>
    %17 = arith.addf %16, %15 : vector<1x128xf32>
    %18 = arith.divf %16, %17 : vector<1x128xf32>
    %19 = math.tanh %13 : vector<1x128xf32>
    %20 = vector.extract_strided_slice %18 {offsets = [0, 0], sizes = [1, 32], strides = [1, 1]} : vector<1x128xf32> to vector<1x32xf32>
    %21 = vector.extract_strided_slice %18 {offsets = [0, 32], sizes = [1, 32], strides = [1, 1]} : vector<1x128xf32> to vector<1x32xf32>
    %22 = vector.extract_strided_slice %19 {offsets = [0, 64], sizes = [1, 32], strides = [1, 1]} : vector<1x128xf32> to vector<1x32xf32>
    %23 = vector.extract_strided_slice %18 {offsets = [0, 96], sizes = [1, 32], strides = [1, 1]} : vector<1x128xf32> to vector<1x32xf32>
    %24 = arith.mulf %21, %8 : vector<1x32xf32>
    %25 = arith.mulf %20, %22 : vector<1x32xf32>
    %26 = arith.addf %24, %25 : vector<1x32xf32>
    %27 = math.tanh %26 : vector<1x32xf32>
    %28 = arith.mulf %23, %27 : vector<1x32xf32>
    %29 = arith.index_cast %c0_i32 : i32 to index
    %c0_14 = arith.constant 0 : index
    %30 = vector.load %arg10[%29, %c0_14] : memref<8x32xf32, #tpu.memory_space<vmem>>, vector<1x32xf32>
    tpu.vector_store %arg10[%29, %c0_14], %28 {strides = array<i32>} : memref<8x32xf32, #tpu.memory_space<vmem>>, vector<1x32xf32>,
    %c1_i32 = arith.constant 1 : i32
    %cst_15 = arith.constant dense<0.000000e+00> : vector<1x128xf32>
    %31 = tpu.matmul %28, %9, %cst_15 {dimension_numbers = #tpu.dot_dimension_numbers<[1], [0], [0], [1], [0, 0, 1, 1], [], []>} : vector<1x32xf32>, vector<32x128xf32>, vector<1x128xf32> -> vector<1x128xf32>
    %32 = arith.index_cast %c1_i32 : i32 to index
    %c0_16 = arith.constant 0 : index
    %33 = vector.load %arg9[%32, %c0_16] : memref<8x128xf32, #tpu.memory_space<vmem>>, vector<1x128xf32>
    %34 = arith.addf %31, %33 : vector<1x128xf32>
    %35 = arith.negf %34 : vector<1x128xf32>
    %36 = math.exp %35 : vector<1x128xf32>
    %cst_17 = arith.constant 1.000000e+00 : f32
    %37 = vector.broadcast %cst_17 : f32 to vector<1x128xf32>
    %38 = arith.addf %37, %36 : vector<1x128xf32>
    %39 = arith.divf %37, %38 : vector<1x128xf32>
    %40 = math.tanh %34 : vector<1x128xf32>
    %41 = vector.extract_strided_slice %39 {offsets = [0, 0], sizes = [1, 32], strides = [1, 1]} : vector<1x128xf32> to vector<1x32xf32>
    %42 = vector.extract_strided_slice %39 {offsets = [0, 32], sizes = [1, 32], strides = [1, 1]} : vector<1x128xf32> to vector<1x32xf32>
    %43 = vector.extract_strided_slice %40 {offsets = [0, 64], sizes = [1, 32], strides = [1, 1]} : vector<1x128xf32> to vector<1x32xf32>
    %44 = vector.extract_strided_slice %39 {offsets = [0, 96], sizes = [1, 32], strides = [1, 1]} : vector<1x128xf32> to vector<1x32xf32>
    %45 = arith.mulf %42, %26 : vector<1x32xf32>
    %46 = arith.mulf %41, %43 : vector<1x32xf32>
    %47 = arith.addf %45, %46 : vector<1x32xf32>
    %48 = math.tanh %47 : vector<1x32xf32>
    %49 = arith.mulf %44, %48 : vector<1x32xf32>
    %50 = arith.index_cast %c1_i32 : i32 to index
    %c0_18 = arith.constant 0 : index
    %51 = vector.load %arg10[%50, %c0_18] : memref<8x32xf32, #tpu.memory_space<vmem>>, vector<1x32xf32>
    tpu.vector_store %arg10[%50, %c0_18], %49 {strides = array<i32>} : memref<8x32xf32, #tpu.memory_space<vmem>>, vector<1x32xf32>,
    %c2_i32 = arith.constant 2 : i32
    %cst_19 = arith.constant dense<0.000000e+00> : vector<1x128xf32>
    %52 = tpu.matmul %49, %9, %cst_19 {dimension_numbers = #tpu.dot_dimension_numbers<[1], [0], [0], [1], [0, 0, 1, 1], [], []>} : vector<1x32xf32>, vector<32x128xf32>, vector<1x128xf32> -> vector<1x128xf32>
    %53 = arith.index_cast %c2_i32 : i32 to index
    %c0_20 = arith.constant 0 : index
    %54 = vector.load %arg9[%53, %c0_20] : memref<8x128xf32, #tpu.memory_space<vmem>>, vector<1x128xf32>
    %55 = arith.addf %52, %54 : vector<1x128xf32>
    %56 = arith.negf %55 : vector<1x128xf32>
    %57 = math.exp %56 : vector<1x128xf32>
    %cst_21 = arith.constant 1.000000e+00 : f32
    %58 = vector.broadcast %cst_21 : f32 to vector<1x128xf32>
    %59 = arith.addf %58, %57 : vector<1x128xf32>
    %60 = arith.divf %58, %59 : vector<1x128xf32>
    %61 = math.tanh %55 : vector<1x128xf32>
    %62 = vector.extract_strided_slice %60 {offsets = [0, 0], sizes = [1, 32], strides = [1, 1]} : vector<1x128xf32> to vector<1x32xf32>
    %63 = vector.extract_strided_slice %60 {offsets = [0, 32], sizes = [1, 32], strides = [1, 1]} : vector<1x128xf32> to vector<1x32xf32>
    %64 = vector.extract_strided_slice %61 {offsets = [0, 64], sizes = [1, 32], strides = [1, 1]} : vector<1x128xf32> to vector<1x32xf32>
    %65 = vector.extract_strided_slice %60 {offsets = [0, 96], sizes = [1, 32], strides = [1, 1]} : vector<1x128xf32> to vector<1x32xf32>
    %66 = arith.mulf %63, %47 : vector<1x32xf32>
    %67 = arith.mulf %62, %64 : vector<1x32xf32>
    %68 = arith.addf %66, %67 : vector<1x32xf32>
    %69 = math.tanh %68 : vector<1x32xf32>
    %70 = arith.mulf %65, %69 : vector<1x32xf32>
    %71 = arith.index_cast %c2_i32 : i32 to index
    %c0_22 = arith.constant 0 : index
    %72 = vector.load %arg10[%71, %c0_22] : memref<8x32xf32, #tpu.memory_space<vmem>>, vector<1x32xf32>
    tpu.vector_store %arg10[%71, %c0_22], %70 {strides = array<i32>} : memref<8x32xf32, #tpu.memory_space<vmem>>, vector<1x32xf32>,
    %c3_i32 = arith.constant 3 : i32
    %cst_23 = arith.constant dense<0.000000e+00> : vector<1x128xf32>
    %73 = tpu.matmul %70, %9, %cst_23 {dimension_numbers = #tpu.dot_dimension_numbers<[1], [0], [0], [1], [0, 0, 1, 1], [], []>} : vector<1x32xf32>, vector<32x128xf32>, vector<1x128xf32> -> vector<1x128xf32>
    %74 = arith.index_cast %c3_i32 : i32 to index
    %c0_24 = arith.constant 0 : index
    %75 = vector.load %arg9[%74, %c0_24] : memref<8x128xf32, #tpu.memory_space<vmem>>, vector<1x128xf32>
    %76 = arith.addf %73, %75 : vector<1x128xf32>
    %77 = arith.negf %76 : vector<1x128xf32>
    %78 = math.exp %77 : vector<1x128xf32>
    %cst_25 = arith.constant 1.000000e+00 : f32
    %79 = vector.broadcast %cst_25 : f32 to vector<1x128xf32>
    %80 = arith.addf %79, %78 : vector<1x128xf32>
    %81 = arith.divf %79, %80 : vector<1x128xf32>
    %82 = math.tanh %76 : vector<1x128xf32>
    %83 = vector.extract_strided_slice %81 {offsets = [0, 0], sizes = [1, 32], strides = [1, 1]} : vector<1x128xf32> to vector<1x32xf32>
    %84 = vector.extract_strided_slice %81 {offsets = [0, 32], sizes = [1, 32], strides = [1, 1]} : vector<1x128xf32> to vector<1x32xf32>
    %85 = vector.extract_strided_slice %82 {offsets = [0, 64], sizes = [1, 32], strides = [1, 1]} : vector<1x128xf32> to vector<1x32xf32>
    %86 = vector.extract_strided_slice %81 {offsets = [0, 96], sizes = [1, 32], strides = [1, 1]} : vector<1x128xf32> to vector<1x32xf32>
    %87 = arith.mulf %84, %68 : vector<1x32xf32>
    %88 = arith.mulf %83, %85 : vector<1x32xf32>
    %89 = arith.addf %87, %88 : vector<1x32xf32>
    %90 = math.tanh %89 : vector<1x32xf32>
    %91 = arith.mulf %86, %90 : vector<1x32xf32>
    %92 = arith.index_cast %c3_i32 : i32 to index
    %c0_26 = arith.constant 0 : index
    %93 = vector.load %arg10[%92, %c0_26] : memref<8x32xf32, #tpu.memory_space<vmem>>, vector<1x32xf32>
    tpu.vector_store %arg10[%92, %c0_26], %91 {strides = array<i32>} : memref<8x32xf32, #tpu.memory_space<vmem>>, vector<1x32xf32>,
    %c4_i32 = arith.constant 4 : i32
    %cst_27 = arith.constant dense<0.000000e+00> : vector<1x128xf32>
    %94 = tpu.matmul %91, %9, %cst_27 {dimension_numbers = #tpu.dot_dimension_numbers<[1], [0], [0], [1], [0, 0, 1, 1], [], []>} : vector<1x32xf32>, vector<32x128xf32>, vector<1x128xf32> -> vector<1x128xf32>
    %95 = arith.index_cast %c4_i32 : i32 to index
    %c0_28 = arith.constant 0 : index
    %96 = vector.load %arg9[%95, %c0_28] : memref<8x128xf32, #tpu.memory_space<vmem>>, vector<1x128xf32>
    %97 = arith.addf %94, %96 : vector<1x128xf32>
    %98 = arith.negf %97 : vector<1x128xf32>
    %99 = math.exp %98 : vector<1x128xf32>
    %cst_29 = arith.constant 1.000000e+00 : f32
    %100 = vector.broadcast %cst_29 : f32 to vector<1x128xf32>
    %101 = arith.addf %100, %99 : vector<1x128xf32>
    %102 = arith.divf %100, %101 : vector<1x128xf32>
    %103 = math.tanh %97 : vector<1x128xf32>
    %104 = vector.extract_strided_slice %102 {offsets = [0, 0], sizes = [1, 32], strides = [1, 1]} : vector<1x128xf32> to vector<1x32xf32>
    %105 = vector.extract_strided_slice %102 {offsets = [0, 32], sizes = [1, 32], strides = [1, 1]} : vector<1x128xf32> to vector<1x32xf32>
    %106 = vector.extract_strided_slice %103 {offsets = [0, 64], sizes = [1, 32], strides = [1, 1]} : vector<1x128xf32> to vector<1x32xf32>
    %107 = vector.extract_strided_slice %102 {offsets = [0, 96], sizes = [1, 32], strides = [1, 1]} : vector<1x128xf32> to vector<1x32xf32>
    %108 = arith.mulf %105, %89 : vector<1x32xf32>
    %109 = arith.mulf %104, %106 : vector<1x32xf32>
    %110 = arith.addf %108, %109 : vector<1x32xf32>
    %111 = math.tanh %110 : vector<1x32xf32>
    %112 = arith.mulf %107, %111 : vector<1x32xf32>
    %113 = arith.index_cast %c4_i32 : i32 to index
    %c0_30 = arith.constant 0 : index
    %114 = vector.load %arg10[%113, %c0_30] : memref<8x32xf32, #tpu.memory_space<vmem>>, vector<1x32xf32>
    tpu.vector_store %arg10[%113, %c0_30], %112 {strides = array<i32>} : memref<8x32xf32, #tpu.memory_space<vmem>>, vector<1x32xf32>,
    %c5_i32 = arith.constant 5 : i32
    %cst_31 = arith.constant dense<0.000000e+00> : vector<1x128xf32>
    %115 = tpu.matmul %112, %9, %cst_31 {dimension_numbers = #tpu.dot_dimension_numbers<[1], [0], [0], [1], [0, 0, 1, 1], [], []>} : vector<1x32xf32>, vector<32x128xf32>, vector<1x128xf32> -> vector<1x128xf32>
    %116 = arith.index_cast %c5_i32 : i32 to index
    %c0_32 = arith.constant 0 : index
    %117 = vector.load %arg9[%116, %c0_32] : memref<8x128xf32, #tpu.memory_space<vmem>>, vector<1x128xf32>
    %118 = arith.addf %115, %117 : vector<1x128xf32>
    %119 = arith.negf %118 : vector<1x128xf32>
    %120 = math.exp %119 : vector<1x128xf32>
    %cst_33 = arith.constant 1.000000e+00 : f32
    %121 = vector.broadcast %cst_33 : f32 to vector<1x128xf32>
    %122 = arith.addf %121, %120 : vector<1x128xf32>
    %123 = arith.divf %121, %122 : vector<1x128xf32>
    %124 = math.tanh %118 : vector<1x128xf32>
    %125 = vector.extract_strided_slice %123 {offsets = [0, 0], sizes = [1, 32], strides = [1, 1]} : vector<1x128xf32> to vector<1x32xf32>
    %126 = vector.extract_strided_slice %123 {offsets = [0, 32], sizes = [1, 32], strides = [1, 1]} : vector<1x128xf32> to vector<1x32xf32>
    %127 = vector.extract_strided_slice %124 {offsets = [0, 64], sizes = [1, 32], strides = [1, 1]} : vector<1x128xf32> to vector<1x32xf32>
    %128 = vector.extract_strided_slice %123 {offsets = [0, 96], sizes = [1, 32], strides = [1, 1]} : vector<1x128xf32> to vector<1x32xf32>
    %129 = arith.mulf %126, %110 : vector<1x32xf32>
    %130 = arith.mulf %125, %127 : vector<1x32xf32>
    %131 = arith.addf %129, %130 : vector<1x32xf32>
    %132 = math.tanh %131 : vector<1x32xf32>
    %133 = arith.mulf %128, %132 : vector<1x32xf32>
    %134 = arith.index_cast %c5_i32 : i32 to index
    %c0_34 = arith.constant 0 : index
    %135 = vector.load %arg10[%134, %c0_34] : memref<8x32xf32, #tpu.memory_space<vmem>>, vector<1x32xf32>
    tpu.vector_store %arg10[%134, %c0_34], %133 {strides = array<i32>} : memref<8x32xf32, #tpu.memory_space<vmem>>, vector<1x32xf32>,
    %c6_i32 = arith.constant 6 : i32
    %cst_35 = arith.constant dense<0.000000e+00> : vector<1x128xf32>
    %136 = tpu.matmul %133, %9, %cst_35 {dimension_numbers = #tpu.dot_dimension_numbers<[1], [0], [0], [1], [0, 0, 1, 1], [], []>} : vector<1x32xf32>, vector<32x128xf32>, vector<1x128xf32> -> vector<1x128xf32>
    %137 = arith.index_cast %c6_i32 : i32 to index
    %c0_36 = arith.constant 0 : index
    %138 = vector.load %arg9[%137, %c0_36] : memref<8x128xf32, #tpu.memory_space<vmem>>, vector<1x128xf32>
    %139 = arith.addf %136, %138 : vector<1x128xf32>
    %140 = arith.negf %139 : vector<1x128xf32>
    %141 = math.exp %140 : vector<1x128xf32>
    %cst_37 = arith.constant 1.000000e+00 : f32
    %142 = vector.broadcast %cst_37 : f32 to vector<1x128xf32>
    %143 = arith.addf %142, %141 : vector<1x128xf32>
    %144 = arith.divf %142, %143 : vector<1x128xf32>
    %145 = math.tanh %139 : vector<1x128xf32>
    %146 = vector.extract_strided_slice %144 {offsets = [0, 0], sizes = [1, 32], strides = [1, 1]} : vector<1x128xf32> to vector<1x32xf32>
    %147 = vector.extract_strided_slice %144 {offsets = [0, 32], sizes = [1, 32], strides = [1, 1]} : vector<1x128xf32> to vector<1x32xf32>
    %148 = vector.extract_strided_slice %145 {offsets = [0, 64], sizes = [1, 32], strides = [1, 1]} : vector<1x128xf32> to vector<1x32xf32>
    %149 = vector.extract_strided_slice %144 {offsets = [0, 96], sizes = [1, 32], strides = [1, 1]} : vector<1x128xf32> to vector<1x32xf32>
    %150 = arith.mulf %147, %131 : vector<1x32xf32>
    %151 = arith.mulf %146, %148 : vector<1x32xf32>
    %152 = arith.addf %150, %151 : vector<1x32xf32>
    %153 = math.tanh %152 : vector<1x32xf32>
    %154 = arith.mulf %149, %153 : vector<1x32xf32>
    %155 = arith.index_cast %c6_i32 : i32 to index
    %c0_38 = arith.constant 0 : index
    %156 = vector.load %arg10[%155, %c0_38] : memref<8x32xf32, #tpu.memory_space<vmem>>, vector<1x32xf32>
    tpu.vector_store %arg10[%155, %c0_38], %154 {strides = array<i32>} : memref<8x32xf32, #tpu.memory_space<vmem>>, vector<1x32xf32>,
    %c7_i32 = arith.constant 7 : i32
    %cst_39 = arith.constant dense<0.000000e+00> : vector<1x128xf32>
    %157 = tpu.matmul %154, %9, %cst_39 {dimension_numbers = #tpu.dot_dimension_numbers<[1], [0], [0], [1], [0, 0, 1, 1], [], []>} : vector<1x32xf32>, vector<32x128xf32>, vector<1x128xf32> -> vector<1x128xf32>
    %158 = arith.index_cast %c7_i32 : i32 to index
    %c0_40 = arith.constant 0 : index
    %159 = vector.load %arg9[%158, %c0_40] : memref<8x128xf32, #tpu.memory_space<vmem>>, vector<1x128xf32>
    %160 = arith.addf %157, %159 : vector<1x128xf32>
    %161 = arith.negf %160 : vector<1x128xf32>
    %162 = math.exp %161 : vector<1x128xf32>
    %cst_41 = arith.constant 1.000000e+00 : f32
    %163 = vector.broadcast %cst_41 : f32 to vector<1x128xf32>
    %164 = arith.addf %163, %162 : vector<1x128xf32>
    %165 = arith.divf %163, %164 : vector<1x128xf32>
    %166 = math.tanh %160 : vector<1x128xf32>
    %167 = vector.extract_strided_slice %165 {offsets = [0, 0], sizes = [1, 32], strides = [1, 1]} : vector<1x128xf32> to vector<1x32xf32>
    %168 = vector.extract_strided_slice %165 {offsets = [0, 32], sizes = [1, 32], strides = [1, 1]} : vector<1x128xf32> to vector<1x32xf32>
    %169 = vector.extract_strided_slice %166 {offsets = [0, 64], sizes = [1, 32], strides = [1, 1]} : vector<1x128xf32> to vector<1x32xf32>
    %170 = vector.extract_strided_slice %165 {offsets = [0, 96], sizes = [1, 32], strides = [1, 1]} : vector<1x128xf32> to vector<1x32xf32>
    %171 = arith.mulf %168, %152 : vector<1x32xf32>
    %172 = arith.mulf %167, %169 : vector<1x32xf32>
    %173 = arith.addf %171, %172 : vector<1x32xf32>
    %174 = math.tanh %173 : vector<1x32xf32>
    %175 = arith.mulf %170, %174 : vector<1x32xf32>
    %176 = arith.index_cast %c7_i32 : i32 to index
    %c0_42 = arith.constant 0 : index
    %177 = vector.load %arg10[%176, %c0_42] : memref<8x32xf32, #tpu.memory_space<vmem>>, vector<1x32xf32>
    tpu.vector_store %arg10[%176, %c0_42], %175 {strides = array<i32>} : memref<8x32xf32, #tpu.memory_space<vmem>>, vector<1x32xf32>,
    %c8_i32 = arith.constant 8 : i32
    %c0_43 = arith.constant 0 : index
    %c0_44 = arith.constant 0 : index
    %178 = vector.load %arg7[%c0_43, %c0_44] : memref<1x32xf32, #tpu.memory_space<vmem>>, vector<1x32xf32>
    tpu.vector_store %arg7[%c0_43, %c0_44], %175 {strides = array<i32>} : memref<1x32xf32, #tpu.memory_space<vmem>>, vector<1x32xf32>,
    %c0_45 = arith.constant 0 : index
    %c0_46 = arith.constant 0 : index
    %179 = vector.load %arg8[%c0_45, %c0_46] : memref<1x32xf32, #tpu.memory_space<vmem>>, vector<1x32xf32>
    tpu.vector_store %arg8[%c0_45, %c0_46], %173 {strides = array<i32>} : memref<1x32xf32, #tpu.memory_space<vmem>>, vector<1x32xf32>,
    %c0_47 = arith.constant 0 : index
    %c0_48 = arith.constant 0 : index
    %180 = vector.load %arg10[%c0_47, %c0_48] : memref<8x32xf32, #tpu.memory_space<vmem>>, vector<8x32xf32>
    %c0_49 = arith.constant 0 : index
    %c0_50 = arith.constant 0 : index
    %181 = vector.load %arg4[%c0_49, %c0_50] : memref<32x128xf32, #tpu.memory_space<vmem>>, vector<32x128xf32>
    %cst_51 = arith.constant dense<0.000000e+00> : vector<8x128xf32>
    %182 = tpu.matmul %180, %181, %cst_51 {dimension_numbers = #tpu.dot_dimension_numbers<[1], [0], [0], [1], [0, 0, 1, 1], [], []>} : vector<8x32xf32>, vector<32x128xf32>, vector<8x128xf32> -> vector<8x128xf32>
    %c0_52 = arith.constant 0 : index
    %c0_53 = arith.constant 0 : index
    %183 = vector.load %arg5[%c0_52, %c0_53] : memref<1x128xf32, #tpu.memory_space<vmem>>, vector<1x128xf32>
    %184 = vector.broadcast %183 : vector<1x128xf32> to vector<8x128xf32>
    %185 = arith.addf %182, %184 : vector<8x128xf32>
    %c0_54 = arith.constant 0 : index
    %c0_55 = arith.constant 0 : index
    %186 = vector.load %arg6[%c0_54, %c0_55] : memref<8x128xf32, #tpu.memory_space<vmem>>, vector<8x128xf32>
    tpu.vector_store %arg6[%c0_54, %c0_55], %185 {strides = array<i32>} : memref<8x128xf32, #tpu.memory_space<vmem>>, vector<8x128xf32>,
    return
  }
}

</mosaic_0001>

<llo_original>
// kernel: lstm_forward.1
$region0: #{lstm_forward.1}
  #allocation0 [shape = 'u32[]', space=smem, size = 0x4, offset = 0x4, fixed_abs, tag = 'smem constant byte address 0x4 - core index']
  #allocation1 [shape = 'u32[72,128]{1,0:T(1,128)}', space=vmem, size = 0x9000, scoped, tag = 'internal scratch']
  #allocation2 [shape = 'f32[8,128]{1,0:T(8,128)}', space=vmem, size = 0x1000, scoped, tag = 'scratch operand']
  #allocation3 [shape = 'f32[8,32]{1,0:T(8,128)}', space=vmem, size = 0x1000, scoped, tag = 'scratch operand']
  %s0 = inlined_call_operand.vmem [shape: f32[8,4], index: 0, kind: input, shape index: {}]
  %s1 = inlined_call_operand.vmem [shape: f32[4,128], index: 1, kind: input, shape index: {}]
  %s2 = inlined_call_operand.vmem [shape: f32[32,128], index: 2, kind: input, shape index: {}]
  %s3 = inlined_call_operand.vmem [shape: f32[1,128], index: 3, kind: input, shape index: {}]
  %s4 = inlined_call_operand.vmem [shape: f32[32,128], index: 4, kind: input, shape index: {}]
  %s5 = inlined_call_operand.vmem [shape: f32[1,128], index: 5, kind: input, shape index: {}]
  %s6 = inlined_call_operand.vmem [shape: f32[8,128], index: 6, kind: output, shape index: {0}]
  %s7 = inlined_call_operand.hbm [shape: f32[1,32], index: 7, kind: output, shape index: {1}]
  %s8 = inlined_call_operand.hbm [shape: f32[1,32], index: 8, kind: output, shape index: {2}]
  %9 = xla_tuple %s6, %s7, %s8
  %s10 = sld [smem:[#allocation0]]
  $region50: #{lstm_forward.1} parent=0
    _
  %s12 = ssub.s32 1, %s10
  %s13 = scalar_select 0, %s12, %s10
  $region1: #{lstm_forward.1} parent=0
    #allocation4 [shape = 'u8[512]{0}', space=vmem, size = 0x400, scoped, tag = 'output window, operand 1, single buffered']
    #allocation5 [shape = 's32[1]{0}', space=sflag, size = 0x4, scoped, tag = 'scoped memory for lstm_forward.1']
    #allocation6 [shape = 'u8[512]{0}', space=vmem, size = 0x400, scoped, tag = 'output window, operand 2, single buffered']
    #allocation7 [shape = 's32[1]{0}', space=sflag, size = 0x4, scoped, tag = 'scoped memory for lstm_forward.1']
    %14 = vsyncpa [#allocation5], 0
    %15 = vsyncpa [#allocation7], 0
    // Predicated region
    $region2: #{lstm_forward.1} parent=1 // pred_check
      _
    $region3: #{lstm_forward.1} parent=1 // pred_check_branch
      %17 = sbr.rel (0) target = $region5
    $region4: #{lstm_forward.1} parent=1 // pred_region
      _
    $region5: #{lstm_forward.1} parent=1 // pred_fallthru
      _
    // Predicated region
    $region6: #{lstm_forward.1} parent=1 // pred_check
      _
    $region7: #{lstm_forward.1} parent=1 // pred_check_branch
      %19 = sbr.rel (0) target = $region9
    $region8: #{lstm_forward.1} parent=1 // pred_region
      _
    $region9: #{lstm_forward.1} parent=1 // pred_fallthru
      _
    // Predicated region
    $region10: #{lstm_forward.1} parent=1 // pred_check
      _
    $region11: #{lstm_forward.1} parent=1 // pred_check_branch
      %21 = sbr.rel (0) target = $region13
    $region12: #{lstm_forward.1} parent=1 // pred_region
      _
    $region13: #{lstm_forward.1} parent=1 // pred_fallthru
      _
    // Predicated region
    $region14: #{lstm_forward.1} parent=1 // pred_check
      _
    $region15: #{lstm_forward.1} parent=1 // pred_check_branch
      %23 = sbr.rel (0) target = $region17
    $region16: #{lstm_forward.1} parent=1 // pred_region
      _
    $region17: #{lstm_forward.1} parent=1 // pred_fallthru
      _
    // Predicated region
    $region18: #{lstm_forward.1} parent=1 // pred_check
      _
    $region19: #{lstm_forward.1} parent=1 // pred_check_branch
      %25 = sbr.rel (0) target = $region21
    $region20: #{lstm_forward.1} parent=1 // pred_region
      _
    $region21: #{lstm_forward.1} parent=1 // pred_fallthru
      _
    // Predicated region
    $region22: #{lstm_forward.1} parent=1 // pred_check
      _
    $region23: #{lstm_forward.1} parent=1 // pred_check_branch
      %27 = sbr.rel (0) target = $region25
    $region24: #{lstm_forward.1} parent=1 // pred_region
      _
    $region25: #{lstm_forward.1} parent=1 // pred_fallthru
      _
    %v28 = vld [vmem:[%s0] sm:$0xff]
    %v29 = vld [vmem:[%s1] sm:$0xf]
    %v30 = vld [vmem:[%s3] sm:$0x1]
    %v32 = vperm.slane %v30, 0
    %vm34 = vcmask 31744
    %v36 = vsel %vm34, %v28, 0
    %vm38 = vcmask 1043456
    %v40 = vsel %vm38, %v29, 0
    %42 = vmatpush.msra.mxu0 0.0
    %43 = vmatpush.msra.mxu0 0.0
    %44 = vmatpush.msra.mxu0 0.0
    %45 = vmatpush.msra.mxu0 0.0
    %46 = vmatpush.msra.mxu0 0.0
    %47 = vmatpush.msra.mxu0 0.0
    %48 = vmatpush.msra.mxu0 0.0
    %49 = vmatpush.msra.mxu0 0.0
    %50 = vmatpush.msra.mxu0 0.0
    %51 = vmatpush.msra.mxu0 0.0
    %52 = vmatpush.msra.mxu0 0.0
    %53 = vmatpush.msra.mxu0 0.0
    %54 = vmatpush.msra.mxu0 0.0
    %55 = vmatpush.msra.mxu0 0.0
    %56 = vmatpush.msra.mxu0 0.0
    %57 = vmatpush.msra.mxu0 %v40
    %58 = vmatmul.f32.gmra.mxu0 %v36
    %v59 = vpop.f32.mrf.mxu0
    %v60 = vadd.f32 %v32, %v59
    %61 = vdwg.mxu0
    %62 = vst [vmem:[#allocation2] sm:$0xff] %v60
    %v63 = vld [vmem:[%s2] sm:$0xff]
    %v64 = vld [vmem:[%s2 + $0x8] sm:$0xff]
    %v65 = vld [vmem:[%s2 + $0x10] sm:$0xff]
    %v66 = vld [vmem:[%s2 + $0x18] sm:$0xff]
    %v67 = vld [vmem:[#allocation2] sm:$0x1]
    %vm68 = vcmask 261120
    %v70 = vsel %vm68, 0.0, 0
    %72 = vmatpush.msra.mxu0 0.0
    %73 = vmatpush.msra.mxu0 0.0
    %74 = vmatpush.msra.mxu0 0.0
    %75 = vmatpush.msra.mxu0 0.0
    %76 = vmatpush.msra.mxu0 0.0
    %77 = vmatpush.msra.mxu0 0.0
    %78 = vmatpush.msra.mxu0 0.0
    %79 = vmatpush.msra.mxu0 0.0
    %80 = vmatpush.msra.mxu0 0.0
    %81 = vmatpush.msra.mxu0 0.0
    %82 = vmatpush.msra.mxu0 0.0
    %83 = vmatpush.msra.mxu0 0.0
    %84 = vmatpush.msra.mxu0 %v66
    %85 = vmatpush.msra.mxu0 %v65
    %86 = vmatpush.msra.mxu0 %v64
    %87 = vmatpush.msra.mxu0 %v63
    %88 = vmatmul.f32.gmra.mxu0 %v70
    %v89 = vpop.f32.mrf.mxu0
    %v90 = vadd.f32 %v67, %v89
    %91 = vdwg.mxu0
    %v92 = vxor.u32 %v90, 2147483648
    %v93 = vmul.f32 %v92, 1.442695
    %v94 = vpow.pop %v93
    %v95 = vadd.f32 %v94, 1.0
    %v96 = vrcp.pop %v95
    %v97 = vmul.f32 %v95, %v96
    %v98 = vsub.f32 1.0, %v97
    %v99 = vmul.f32 %v96, %v98
    %v100 = vadd.f32 %v96, %v99
    %vm101 = vweird.f32 %v95
    %vm102 = vweird.f32 %v96
    %vm103 = vmor %vm101, %vm102
    %v104 = vsel %vm103, %v96, %v100
    %v105 = vand.u32 2147483647, %v95
    %vm106 = vcmp.eq.f32.partialorder %v105, 8.507059e+37
    %v107 = vand.u32 %v95, 2147483648
    %v108 = vor.u32 1.1754944e-38, %v107
    %v109 = vsel %vm106, %v108, %v104
    %v110 = vmul.f32 1.0, %v109
    %v111 = vtanh.pop %v90
    %v112 = vmul.f32 %v110, 0.0
    %114 = vrot.lane.b32.xlu0 %v111, 64
    %v115 = vpop.permute.xlu0 %114
    %v117 = vmul.f32 %v110, %v115
    %119 = vrot.lane.b32.xlu0 %v117, 32
    %v120 = vpop.permute.xlu0 %119
    %v122 = vadd.f32 %v112, %v120
    %v123 = vtanh.pop %v122
    %125 = vrot.lane.b32.xlu0 %v123, 64
    %v126 = vpop.permute.xlu0 %125
    %v128 = vmul.f32 %v110, %v126
    %130 = vrot.lane.b32.xlu0 %v128, 32
    %v131 = vpop.permute.xlu0 %130
    %vm133 = vcmask 253952
    %134 = vst.msk [vmem:[#allocation3] sm:$0x1] %vm133, %v131
    %v135 = vld [vmem:[#allocation2 + $0x1] sm:$0x1]
    %v136 = vsel %vm68, %v131, 0
    %138 = vmatpush.msra.mxu0 0.0
    %139 = vmatpush.msra.mxu0 0.0
    %140 = vmatpush.msra.mxu0 0.0
    %141 = vmatpush.msra.mxu0 0.0
    %142 = vmatpush.msra.mxu0 0.0
    %143 = vmatpush.msra.mxu0 0.0
    %144 = vmatpush.msra.mxu0 0.0
    %145 = vmatpush.msra.mxu0 0.0
    %146 = vmatpush.msra.mxu0 0.0
    %147 = vmatpush.msra.mxu0 0.0
    %148 = vmatpush.msra.mxu0 0.0
    %149 = vmatpush.msra.mxu0 0.0
    %150 = vmatpush.msra.mxu0 %v66
    %151 = vmatpush.msra.mxu0 %v65
    %152 = vmatpush.msra.mxu0 %v64
    %153 = vmatpush.msra.mxu0 %v63
    %154 = vmatmul.f32.gmra.mxu0 %v136
    %v155 = vpop.f32.mrf.mxu0
    %v156 = vadd.f32 %v135, %v155
    %157 = vdwg.mxu0
    %v158 = vxor.u32 %v156, 2147483648
    %v159 = vmul.f32 %v158, 1.442695
    %v160 = vpow.pop %v159
    %v161 = vadd.f32 %v160, 1.0
    %v162 = vrcp.pop %v161
    %v163 = vmul.f32 %v161, %v162
    %v164 = vsub.f32 1.0, %v163
    %v165 = vmul.f32 %v162, %v164
    %v166 = vadd.f32 %v162, %v165
    %vm167 = vweird.f32 %v161
    %vm168 = vweird.f32 %v162
    %vm169 = vmor %vm167, %vm168
    %v170 = vsel %vm169, %v162, %v166
    %v171 = vand.u32 2147483647, %v161
    %vm172 = vcmp.eq.f32.partialorder %v171, 8.507059e+37
    %v173 = vand.u32 %v161, 2147483648
    %v174 = vor.u32 1.1754944e-38, %v173
    %v175 = vsel %vm172, %v174, %v170
    %v176 = vmul.f32 1.0, %v175
    %v177 = vtanh.pop %v156
    %v178 = vmul.f32 %v176, %v122
    %180 = vrot.lane.b32.xlu0 %v177, 64
    %v181 = vpop.permute.xlu0 %180
    %v183 = vmul.f32 %v176, %v181
    %185 = vrot.lane.b32.xlu0 %v183, 32
    %v186 = vpop.permute.xlu0 %185
    %v188 = vadd.f32 %v178, %v186
    %v189 = vtanh.pop %v188
    %191 = vrot.lane.b32.xlu0 %v189, 64
    %v192 = vpop.permute.xlu0 %191
    %v194 = vmul.f32 %v176, %v192
    %196 = vrot.lane.b32.xlu0 %v194, 32
    %v197 = vpop.permute.xlu0 %196
    %199 = vst.msk [vmem:[#allocation3 + $0x1] sm:$0x1] %vm133, %v197
    %v200 = vld [vmem:[#allocation2 + $0x2] sm:$0x1]
    %v201 = vsel %vm68, %v197, 0
    %203 = vmatpush.msra.mxu0 0.0
    %204 = vmatpush.msra.mxu0 0.0
    %205 = vmatpush.msra.mxu0 0.0
    %206 = vmatpush.msra.mxu0 0.0
    %207 = vmatpush.msra.mxu0 0.0
    %208 = vmatpush.msra.mxu0 0.0
    %209 = vmatpush.msra.mxu0 0.0
    %210 = vmatpush.msra.mxu0 0.0
    %211 = vmatpush.msra.mxu0 0.0
    %212 = vmatpush.msra.mxu0 0.0
    %213 = vmatpush.msra.mxu0 0.0
    %214 = vmatpush.msra.mxu0 0.0
    %215 = vmatpush.msra.mxu0 %v66
    %216 = vmatpush.msra.mxu0 %v65
    %217 = vmatpush.msra.mxu0 %v64
    %218 = vmatpush.msra.mxu0 %v63
    %219 = vmatmul.f32.gmra.mxu0 %v201
    %v220 = vpop.f32.mrf.mxu0
    %v221 = vadd.f32 %v200, %v220
    %222 = vdwg.mxu0
    %v223 = vxor.u32 %v221, 2147483648
    %v224 = vmul.f32 %v223, 1.442695
    %v225 = vpow.pop %v224
    %v226 = vadd.f32 %v225, 1.0
    %v227 = vrcp.pop %v226
    %v228 = vmul.f32 %v226, %v227
    %v229 = vsub.f32 1.0, %v228
    %v230 = vmul.f32 %v227, %v229
    %v231 = vadd.f32 %v227, %v230
    %vm232 = vweird.f32 %v226
    %vm233 = vweird.f32 %v227
    %vm234 = vmor %vm232, %vm233
    %v235 = vsel %vm234, %v227, %v231
    %v236 = vand.u32 2147483647, %v226
    %vm237 = vcmp.eq.f32.partialorder %v236, 8.507059e+37
    %v238 = vand.u32 %v226, 2147483648
    %v239 = vor.u32 1.1754944e-38, %v238
    %v240 = vsel %vm237, %v239, %v235
    %v241 = vmul.f32 1.0, %v240
    %v242 = vtanh.pop %v221
    %v243 = vmul.f32 %v241, %v188
    %245 = vrot.lane.b32.xlu0 %v242, 64
    %v246 = vpop.permute.xlu0 %245
    %v248 = vmul.f32 %v241, %v246
    %250 = vrot.lane.b32.xlu0 %v248, 32
    %v251 = vpop.permute.xlu0 %250
    %v253 = vadd.f32 %v243, %v251
    %v254 = vtanh.pop %v253
    %256 = vrot.lane.b32.xlu0 %v254, 64
    %v257 = vpop.permute.xlu0 %256
    %v259 = vmul.f32 %v241, %v257
    %261 = vrot.lane.b32.xlu0 %v259, 32
    %v262 = vpop.permute.xlu0 %261
    %264 = vst.msk [vmem:[#allocation3 + $0x2] sm:$0x1] %vm133, %v262
    %v265 = vld [vmem:[#allocation2 + $0x3] sm:$0x1]
    %v266 = vsel %vm68, %v262, 0
    %268 = vmatpush.msra.mxu0 0.0
    %269 = vmatpush.msra.mxu0 0.0
    %270 = vmatpush.msra.mxu0 0.0
    %271 = vmatpush.msra.mxu0 0.0
    %272 = vmatpush.msra.mxu0 0.0
    %273 = vmatpush.msra.mxu0 0.0
    %274 = vmatpush.msra.mxu0 0.0
    %275 = vmatpush.msra.mxu0 0.0
    %276 = vmatpush.msra.mxu0 0.0
    %277 = vmatpush.msra.mxu0 0.0
    %278 = vmatpush.msra.mxu0 0.0
    %279 = vmatpush.msra.mxu0 0.0
    %280 = vmatpush.msra.mxu0 %v66
    %281 = vmatpush.msra.mxu0 %v65
    %282 = vmatpush.msra.mxu0 %v64
    %283 = vmatpush.msra.mxu0 %v63
    %284 = vmatmul.f32.gmra.mxu0 %v266
    %v285 = vpop.f32.mrf.mxu0
    %v286 = vadd.f32 %v265, %v285
    %287 = vdwg.mxu0
    %v288 = vxor.u32 %v286, 2147483648
    %v289 = vmul.f32 %v288, 1.442695
    %v290 = vpow.pop %v289
    %v291 = vadd.f32 %v290, 1.0
    %v292 = vrcp.pop %v291
    %v293 = vmul.f32 %v291, %v292
    %v294 = vsub.f32 1.0, %v293
    %v295 = vmul.f32 %v292, %v294
    %v296 = vadd.f32 %v292, %v295
    %vm297 = vweird.f32 %v291
    %vm298 = vweird.f32 %v292
    %vm299 = vmor %vm297, %vm298
    %v300 = vsel %vm299, %v292, %v296
    %v301 = vand.u32 2147483647, %v291
    %vm302 = vcmp.eq.f32.partialorder %v301, 8.507059e+37
    %v303 = vand.u32 %v291, 2147483648
    %v304 = vor.u32 1.1754944e-38, %v303
    %v305 = vsel %vm302, %v304, %v300
    %v306 = vmul.f32 1.0, %v305
    %v307 = vtanh.pop %v286
    %v308 = vmul.f32 %v306, %v253
    %310 = vrot.lane.b32.xlu0 %v307, 64
    %v311 = vpop.permute.xlu0 %310
    %v313 = vmul.f32 %v306, %v311
    %315 = vrot.lane.b32.xlu0 %v313, 32
    %v316 = vpop.permute.xlu0 %315
    %v318 = vadd.f32 %v308, %v316
    %v319 = vtanh.pop %v318
    %321 = vrot.lane.b32.xlu0 %v319, 64
    %v322 = vpop.permute.xlu0 %321
    %v324 = vmul.f32 %v306, %v322
    %326 = vrot.lane.b32.xlu0 %v324, 32
    %v327 = vpop.permute.xlu0 %326
    %329 = vst.msk [vmem:[#allocation3 + $0x3] sm:$0x1] %vm133, %v327
    %v330 = vld [vmem:[#allocation2 + $0x4] sm:$0x1]
    %v331 = vsel %vm68, %v327, 0
    %333 = vmatpush.msra.mxu0 0.0
    %334 = vmatpush.msra.mxu0 0.0
    %335 = vmatpush.msra.mxu0 0.0
    %336 = vmatpush.msra.mxu0 0.0
    %337 = vmatpush.msra.mxu0 0.0
    %338 = vmatpush.msra.mxu0 0.0
    %339 = vmatpush.msra.mxu0 0.0
    %340 = vmatpush.msra.mxu0 0.0
    %341 = vmatpush.msra.mxu0 0.0
    %342 = vmatpush.msra.mxu0 0.0
    %343 = vmatpush.msra.mxu0 0.0
    %344 = vmatpush.msra.mxu0 0.0
    %345 = vmatpush.msra.mxu0 %v66
    %346 = vmatpush.msra.mxu0 %v65
    %347 = vmatpush.msra.mxu0 %v64
    %348 = vmatpush.msra.mxu0 %v63
    %349 = vmatmul.f32.gmra.mxu0 %v331
    %v350 = vpop.f32.mrf.mxu0
    %v351 = vadd.f32 %v330, %v350
    %352 = vdwg.mxu0
    %v353 = vxor.u32 %v351, 2147483648
    %v354 = vmul.f32 %v353, 1.442695
    %v355 = vpow.pop %v354
    %v356 = vadd.f32 %v355, 1.0
    %v357 = vrcp.pop %v356
    %v358 = vmul.f32 %v356, %v357
    %v359 = vsub.f32 1.0, %v358
    %v360 = vmul.f32 %v357, %v359
    %v361 = vadd.f32 %v357, %v360
    %vm362 = vweird.f32 %v356
    %vm363 = vweird.f32 %v357
    %vm364 = vmor %vm362, %vm363
    %v365 = vsel %vm364, %v357, %v361
    %v366 = vand.u32 2147483647, %v356
    %vm367 = vcmp.eq.f32.partialorder %v366, 8.507059e+37
    %v368 = vand.u32 %v356, 2147483648
    %v369 = vor.u32 1.1754944e-38, %v368
    %v370 = vsel %vm367, %v369, %v365
    %v371 = vmul.f32 1.0, %v370
    %v372 = vtanh.pop %v351
    %v373 = vmul.f32 %v371, %v318
    %375 = vrot.lane.b32.xlu0 %v372, 64
    %v376 = vpop.permute.xlu0 %375
    %v378 = vmul.f32 %v371, %v376
    %380 = vrot.lane.b32.xlu0 %v378, 32
    %v381 = vpop.permute.xlu0 %380
    %v383 = vadd.f32 %v373, %v381
    %v384 = vtanh.pop %v383
    %386 = vrot.lane.b32.xlu0 %v384, 64
    %v387 = vpop.permute.xlu0 %386
    %v389 = vmul.f32 %v371, %v387
    %391 = vrot.lane.b32.xlu0 %v389, 32
    %v392 = vpop.permute.xlu0 %391
    %394 = vst.msk [vmem:[#allocation3 + $0x4] sm:$0x1] %vm133, %v392
    %v395 = vld [vmem:[#allocation2 + $0x5] sm:$0x1]
    %v396 = vsel %vm68, %v392, 0
    %398 = vmatpush.msra.mxu0 0.0
    %399 = vmatpush.msra.mxu0 0.0
    %400 = vmatpush.msra.mxu0 0.0
    %401 = vmatpush.msra.mxu0 0.0
    %402 = vmatpush.msra.mxu0 0.0
    %403 = vmatpush.msra.mxu0 0.0
    %404 = vmatpush.msra.mxu0 0.0
    %405 = vmatpush.msra.mxu0 0.0
    %406 = vmatpush.msra.mxu0 0.0
    %407 = vmatpush.msra.mxu0 0.0
    %408 = vmatpush.msra.mxu0 0.0
    %409 = vmatpush.msra.mxu0 0.0
    %410 = vmatpush.msra.mxu0 %v66
    %411 = vmatpush.msra.mxu0 %v65
    %412 = vmatpush.msra.mxu0 %v64
    %413 = vmatpush.msra.mxu0 %v63
    %414 = vmatmul.f32.gmra.mxu0 %v396
    %v415 = vpop.f32.mrf.mxu0
    %v416 = vadd.f32 %v395, %v415
    %417 = vdwg.mxu0
    %v418 = vxor.u32 %v416, 2147483648
    %v419 = vmul.f32 %v418, 1.442695
    %v420 = vpow.pop %v419
    %v421 = vadd.f32 %v420, 1.0
    %v422 = vrcp.pop %v421
    %v423 = vmul.f32 %v421, %v422
    %v424 = vsub.f32 1.0, %v423
    %v425 = vmul.f32 %v422, %v424
    %v426 = vadd.f32 %v422, %v425
    %vm427 = vweird.f32 %v421
    %vm428 = vweird.f32 %v422
    %vm429 = vmor %vm427, %vm428
    %v430 = vsel %vm429, %v422, %v426
    %v431 = vand.u32 2147483647, %v421
    %vm432 = vcmp.eq.f32.partialorder %v431, 8.507059e+37
    %v433 = vand.u32 %v421, 2147483648
    %v434 = vor.u32 1.1754944e-38, %v433
    %v435 = vsel %vm432, %v434, %v430
    %v436 = vmul.f32 1.0, %v435
    %v437 = vtanh.pop %v416
    %v438 = vmul.f32 %v436, %v383
    %440 = vrot.lane.b32.xlu0 %v437, 64
    %v441 = vpop.permute.xlu0 %440
    %v443 = vmul.f32 %v436, %v441
    %445 = vrot.lane.b32.xlu0 %v443, 32
    %v446 = vpop.permute.xlu0 %445
    %v448 = vadd.f32 %v438, %v446
    %v449 = vtanh.pop %v448
    %451 = vrot.lane.b32.xlu0 %v449, 64
    %v452 = vpop.permute.xlu0 %451
    %v454 = vmul.f32 %v436, %v452
    %456 = vrot.lane.b32.xlu0 %v454, 32
    %v457 = vpop.permute.xlu0 %456
    %459 = vst.msk [vmem:[#allocation3 + $0x5] sm:$0x1] %vm133, %v457
    %v460 = vld [vmem:[#allocation2 + $0x6] sm:$0x1]
    %v461 = vsel %vm68, %v457, 0
    %463 = vmatpush.msra.mxu0 0.0
    %464 = vmatpush.msra.mxu0 0.0
    %465 = vmatpush.msra.mxu0 0.0
    %466 = vmatpush.msra.mxu0 0.0
    %467 = vmatpush.msra.mxu0 0.0
    %468 = vmatpush.msra.mxu0 0.0
    %469 = vmatpush.msra.mxu0 0.0
    %470 = vmatpush.msra.mxu0 0.0
    %471 = vmatpush.msra.mxu0 0.0
    %472 = vmatpush.msra.mxu0 0.0
    %473 = vmatpush.msra.mxu0 0.0
    %474 = vmatpush.msra.mxu0 0.0
    %475 = vmatpush.msra.mxu0 %v66
    %476 = vmatpush.msra.mxu0 %v65
    %477 = vmatpush.msra.mxu0 %v64
    %478 = vmatpush.msra.mxu0 %v63
    %479 = vmatmul.f32.gmra.mxu0 %v461
    %v480 = vpop.f32.mrf.mxu0
    %v481 = vadd.f32 %v460, %v480
    %482 = vdwg.mxu0
    %v483 = vxor.u32 %v481, 2147483648
    %v484 = vmul.f32 %v483, 1.442695
    %v485 = vpow.pop %v484
    %v486 = vadd.f32 %v485, 1.0
    %v487 = vrcp.pop %v486
    %v488 = vmul.f32 %v486, %v487
    %v489 = vsub.f32 1.0, %v488
    %v490 = vmul.f32 %v487, %v489
    %v491 = vadd.f32 %v487, %v490
    %vm492 = vweird.f32 %v486
    %vm493 = vweird.f32 %v487
    %vm494 = vmor %vm492, %vm493
    %v495 = vsel %vm494, %v487, %v491
    %v496 = vand.u32 2147483647, %v486
    %vm497 = vcmp.eq.f32.partialorder %v496, 8.507059e+37
    %v498 = vand.u32 %v486, 2147483648
    %v499 = vor.u32 1.1754944e-38, %v498
    %v500 = vsel %vm497, %v499, %v495
    %v501 = vmul.f32 1.0, %v500
    %v502 = vtanh.pop %v481
    %v503 = vmul.f32 %v501, %v448
    %505 = vrot.lane.b32.xlu0 %v502, 64
    %v506 = vpop.permute.xlu0 %505
    %v508 = vmul.f32 %v501, %v506
    %510 = vrot.lane.b32.xlu0 %v508, 32
    %v511 = vpop.permute.xlu0 %510
    %v513 = vadd.f32 %v503, %v511
    %v514 = vtanh.pop %v513
    %516 = vrot.lane.b32.xlu0 %v514, 64
    %v517 = vpop.permute.xlu0 %516
    %v519 = vmul.f32 %v501, %v517
    %521 = vrot.lane.b32.xlu0 %v519, 32
    %v522 = vpop.permute.xlu0 %521
    %524 = vst.msk [vmem:[#allocation3 + $0x6] sm:$0x1] %vm133, %v522
    %v525 = vld [vmem:[#allocation2 + $0x7] sm:$0x1]
    %v526 = vsel %vm68, %v522, 0
    %528 = vmatpush.msra.mxu0 0.0
    %529 = vmatpush.msra.mxu0 0.0
    %530 = vmatpush.msra.mxu0 0.0
    %531 = vmatpush.msra.mxu0 0.0
    %532 = vmatpush.msra.mxu0 0.0
    %533 = vmatpush.msra.mxu0 0.0
    %534 = vmatpush.msra.mxu0 0.0
    %535 = vmatpush.msra.mxu0 0.0
    %536 = vmatpush.msra.mxu0 0.0
    %537 = vmatpush.msra.mxu0 0.0
    %538 = vmatpush.msra.mxu0 0.0
    %539 = vmatpush.msra.mxu0 0.0
    %540 = vmatpush.msra.mxu0 %v66
    %541 = vmatpush.msra.mxu0 %v65
    %542 = vmatpush.msra.mxu0 %v64
    %543 = vmatpush.msra.mxu0 %v63
    %544 = vmatmul.f32.gmra.mxu0 %v526
    %v545 = vpop.f32.mrf.mxu0
    %v546 = vadd.f32 %v525, %v545
    %547 = vdwg.mxu0
    %v548 = vxor.u32 %v546, 2147483648
    %v549 = vmul.f32 %v548, 1.442695
    %v550 = vpow.pop %v549
    %v551 = vadd.f32 %v550, 1.0
    %v552 = vrcp.pop %v551
    %v553 = vmul.f32 %v551, %v552
    %v554 = vsub.f32 1.0, %v553
    %v555 = vmul.f32 %v552, %v554
    %v556 = vadd.f32 %v552, %v555
    %vm557 = vweird.f32 %v551
    %vm558 = vweird.f32 %v552
    %vm559 = vmor %vm557, %vm558
    %v560 = vsel %vm559, %v552, %v556
    %v561 = vand.u32 2147483647, %v551
    %vm562 = vcmp.eq.f32.partialorder %v561, 8.507059e+37
    %v563 = vand.u32 %v551, 2147483648
    %v564 = vor.u32 1.1754944e-38, %v563
    %v565 = vsel %vm562, %v564, %v560
    %v566 = vmul.f32 1.0, %v565
    %v567 = vtanh.pop %v546
    %v568 = vmul.f32 %v566, %v513
    %570 = vrot.lane.b32.xlu0 %v567, 64
    %v571 = vpop.permute.xlu0 %570
    %v573 = vmul.f32 %v566, %v571
    %575 = vrot.lane.b32.xlu0 %v573, 32
    %v576 = vpop.permute.xlu0 %575
    %v578 = vadd.f32 %v568, %v576
    %v579 = vtanh.pop %v578
    %581 = vrot.lane.b32.xlu0 %v579, 64
    %v582 = vpop.permute.xlu0 %581
    %v584 = vmul.f32 %v566, %v582
    %586 = vrot.lane.b32.xlu0 %v584, 32
    %v587 = vpop.permute.xlu0 %586
    %589 = vst.msk [vmem:[#allocation3 + $0x7] sm:$0x1] %vm133, %v587
    %590 = vst.msk [vmem:[#allocation4] sm:$0x1] %vm133, %v587
    %592 = vrot.lane.b32.xlu0 %v578, 96
    %v593 = vpop.permute.xlu0 %592
    %595 = vst.msk [vmem:[#allocation6] sm:$0x1] %vm133, %v593
    %v596 = vld [vmem:[#allocation3] sm:$0xff]
    %v597 = vld [vmem:[%s4] sm:$0xff]
    %v598 = vld [vmem:[%s4 + $0x8] sm:$0xff]
    %v599 = vld [vmem:[%s4 + $0x10] sm:$0xff]
    %v600 = vld [vmem:[%s4 + $0x18] sm:$0xff]
    %v601 = vld [vmem:[%s5] sm:$0x1]
    %v603 = vperm.slane %v601, 0
    %v606 = vsel %vm68, %v596, 0
    %608 = vmatpush.msra.mxu0 0.0
    %609 = vmatpush.msra.mxu0 0.0
    %610 = vmatpush.msra.mxu0 0.0
    %611 = vmatpush.msra.mxu0 0.0
    %612 = vmatpush.msra.mxu0 0.0
    %613 = vmatpush.msra.mxu0 0.0
    %614 = vmatpush.msra.mxu0 0.0
    %615 = vmatpush.msra.mxu0 0.0
    %616 = vmatpush.msra.mxu0 0.0
    %617 = vmatpush.msra.mxu0 0.0
    %618 = vmatpush.msra.mxu0 0.0
    %619 = vmatpush.msra.mxu0 0.0
    %620 = vmatpush.msra.mxu0 %v600
    %621 = vmatpush.msra.mxu0 %v599
    %622 = vmatpush.msra.mxu0 %v598
    %623 = vmatpush.msra.mxu0 %v597
    %624 = vmatmul.f32.gmra.mxu0 %v606
    %v625 = vpop.f32.mrf.mxu0
    %v626 = vadd.f32 %v603, %v625
    %627 = vdwg.mxu0
    %628 = vst [vmem:[%s6] sm:$0xff] %v626
    // Predicated region
    $region26: #{lstm_forward.1} parent=1 // pred_check
      _
    $region27: #{lstm_forward.1} parent=1 // pred_check_branch
      %630 = sbr.rel (0) target = $region29
    $region28: #{lstm_forward.1} parent=1 // pred_region
      _
    $region29: #{lstm_forward.1} parent=1 // pred_fallthru
      _
    // Predicated region
    $region30: #{lstm_forward.1} parent=1 // pred_check
      _
    $region31: #{lstm_forward.1} parent=1 // pred_check_branch
      %632 = sbr.rel (0) target = $region33
    $region32: #{lstm_forward.1} parent=1 // pred_region
      %634 = vsyncadd [#allocation5], 0
      %s636 = sshll.u32 [#allocation4], 4
      %s637 = int_to_ptr.vmem [resolvable:$true] %s636
      %s638 = sshll.u32 %s7, 4
      %s639 = int_to_ptr.hbm [resolvable:$true] %s638
      %641 = dma.vmem_to_hbm [thread:$0]  %s637, 16, %s639, [#allocation5]
    $region33: #{lstm_forward.1} parent=1 // pred_fallthru
      _
    // Predicated region
    $region34: #{lstm_forward.1} parent=1 // pred_check
      _
    $region35: #{lstm_forward.1} parent=1 // pred_check_branch
      %643 = sbr.rel (0) target = $region37
    $region36: #{lstm_forward.1} parent=1 // pred_region
      %645 = vsyncadd [#allocation7], 0
      %s647 = sshll.u32 [#allocation6], 4
      %s648 = int_to_ptr.vmem [resolvable:$true] %s647
      %s649 = sshll.u32 %s8, 4
      %s650 = int_to_ptr.hbm [resolvable:$true] %s649
      %652 = dma.vmem_to_hbm [thread:$0]  %s648, 16, %s650, [#allocation7]
    $region37: #{lstm_forward.1} parent=1 // pred_fallthru
      _
    // Predicated region
    $region38: #{lstm_forward.1} parent=1 // pred_check
      _
    $region39: #{lstm_forward.1} parent=1 // pred_check_branch
      %654 = sbr.rel (0) target = $region41
    $region40: #{lstm_forward.1} parent=1 // pred_region
      _
    $region41: #{lstm_forward.1} parent=1 // pred_fallthru
      _
    // Predicated region
    $region42: #{lstm_forward.1} parent=1 // pred_check
      _
    $region43: #{lstm_forward.1} parent=1 // pred_check_branch
      %656 = sbr.rel (0) target = $region45
    $region44: #{lstm_forward.1} parent=1 // pred_region
      %658 = dma.done [#allocation5], 16
    $region45: #{lstm_forward.1} parent=1 // pred_fallthru
      _
    // Predicated region
    $region46: #{lstm_forward.1} parent=1 // pred_check
      _
    $region47: #{lstm_forward.1} parent=1 // pred_check_branch
      %660 = sbr.rel (0) target = $region49
    $region48: #{lstm_forward.1} parent=1 // pred_region
      %662 = dma.done [#allocation7], 16
    $region49: #{lstm_forward.1} parent=1 // pred_fallthru
      _
    %663 = vsyncpa [#allocation5], 1
    %664 = vsyncpa [#allocation7], 1

</llo_original>
